<compile_context>
chip_gen: v5e
topology: v5e:2x2
jax: 0.10.0
libtpu: 0.0.40
codegen_flags: <defaults>
</compile_context>

<pallas_src>
import math

import jax
import jax.numpy as jnp
from jax.experimental import pallas as pl
from jax.experimental.pallas import tpu as pltpu


def _round_up(x: int, m: int) -> int:
    return ((x + m - 1) // m) * m


def _lane_pack_factor(c_in: int, c_out: int, *, lane_target: int = 256,
                      max_pack: int = 32) -> int:
    """Pack factor p such that p*c_in and p*c_out are lane-dense (mult of 128),
    grown towards `lane_target` lanes (256 matches the v6e/v7x MXU)."""
    li = 128 // math.gcd(128, c_in)
    lo = 128 // math.gcd(128, c_out)
    p = li * lo // math.gcd(li, lo)           # smallest p hitting 128-lane density
    if p > max_pack:
        return 1
    while 2 * p <= max_pack and min(p * c_in, p * c_out) < lane_target:
        p *= 2
    return p


def _gemm_bias_kernel(x_ref, w_ref, b_ref, o_ref):
    # Hot path: (tm, K) @ (K, N) on the MXU with f32 accumulation, VPU bias
    # add, single lane-dense store (masked only on the ragged last block).
    acc = jnp.dot(x_ref[...], w_ref[...], preferred_element_type=jnp.float32)
    o_ref[...] = (acc + b_ref[...]).astype(o_ref.dtype)


def outer_linear(x, W1, W2, bias=None, cos_coef=80.0, *,
                 tile_vmem_bytes=24 << 20, lane_target=256):
    """x: (..., in_channels) -> (..., out_channels), matching OuterLinearLayer."""
    in_channels, rank = W1.shape
    rank2, out_channels = W2.shape
    assert rank == rank2 and x.shape[-1] == in_channels

    out_dtype = x.dtype
    itemsize = jnp.dtype(out_dtype).itemsize
    sublane = 8 * max(1, 4 // itemsize)       # 8 (f32) / 16 (bf16) / 32 (int8/fp8)

    # ---- One-time effective-weight build (hoisted out of the grid loop). ----
    # Kept in f32: cos args reach ~|cos_coef| * (pi/2)^2; never compute in bf16.
    weight = jnp.cos(cos_coef * (W1.astype(jnp.float32) @ W2.astype(jnp.float32)))
    if bias is None:
        bias = jnp.zeros((out_channels,), jnp.float32)
    bias = bias.astype(jnp.float32)

    # ---- Lane-dense packing: p original rows -> one (p*C)-lane slab row. ----
    p = _lane_pack_factor(in_channels, out_channels, lane_target=lane_target)
    k_lane = p * in_channels
    n_lane = p * out_channels
    # Block-diagonal replicated weight; exact 0/1 identity keeps values intact.
    w_big = jnp.kron(jnp.eye(p, dtype=jnp.float32), weight).astype(out_dtype)
    b_big = jnp.tile(bias, (p,)).reshape(1, n_lane)       # f32, added post-acc

    lead_shape = x.shape[:-1]
    x2d = x.reshape(-1, in_channels)          # no dtype cast: operands stay x.dtype
    m = x2d.shape[0]

    # Single conditional pad to the pack factor (skipped in the aligned case).
    mp = _round_up(max(m, 1), p)
    if mp != m:
        x2d = jnp.pad(x2d, ((0, mp - m), (0, 0)))
    ms = mp // p
    x_slab = x2d.reshape(ms, k_lane)

    # ---- Row tile from a VMEM budget (double-buffered x + out tiles). ----
    per_row = 2 * (k_lane + n_lane) * itemsize
    tm = max(sublane, tile_vmem_bytes // per_row)
    tm = min(tm, _round_up(ms, sublane))
    tm = _round_up(tm, sublane)
    # Keep >=2 grid steps when there is enough work (feeds both v7x cores).
    if pl.cdiv(ms, tm) < 2 and ms >= 2 * sublane:
        tm = _round_up(pl.cdiv(ms, 2), sublane)
    grid = (pl.cdiv(ms, tm),)                 # ragged last block: no second pad

    # VMEM limit from the actual footprint, capped with v7x headroom.
    tile_bytes = 2 * tm * (k_lane + n_lane) * itemsize
    const_bytes = 2 * (k_lane * n_lane * itemsize + n_lane * 4)
    vmem_limit = int(min(max(tile_bytes + const_bytes + (4 << 20), 16 << 20),
                         48 << 20))

    out_slab = pl.pallas_call(
        _gemm_bias_kernel,
        out_shape=jax.ShapeDtypeStruct((ms, n_lane), out_dtype),
        grid_spec=pltpu.PrefetchScalarGridSpec(
            num_scalar_prefetch=0,
            grid=grid,
            in_specs=[
                pl.BlockSpec((tm, k_lane), lambda i: (i, 0)),       # x slab tile
                pl.BlockSpec((k_lane, n_lane), lambda i: (0, 0)),   # weight (resident)
                pl.BlockSpec((1, n_lane), lambda i: (0, 0)),        # bias (resident)
            ],
            out_specs=pl.BlockSpec((tm, n_lane), lambda i: (i, 0)),
        ),
        compiler_params=pltpu.CompilerParams(
            dimension_semantics=("parallel",),
            vmem_limit_bytes=vmem_limit,
        ),
    )(x_slab, w_big, b_big)

    # Undo packing (row-major reshape) and drop the pad rows, if any.
    out2d = out_slab.reshape(mp, out_channels)[:m]
    return out2d.reshape(*lead_shape, out_channels)


if __name__ == "__main__":
    in_channels = 32
    out_channels = 32
    rank = 1
    cos_coef = 80.0

    key = jax.random.PRNGKey(0)
    kx, k1, k2, kx2, kb = jax.random.split(key, 5)

    half_pi = jnp.pi / 2
    W1 = jax.random.uniform(k1, (in_channels, rank),
                            minval=-half_pi, maxval=half_pi, dtype=jnp.float32)
    W2 = jax.random.uniform(k2, (rank, out_channels),
                            minval=-half_pi, maxval=half_pi, dtype=jnp.float32)
    bias = 0.1 * jax.random.normal(kb, (out_channels,), dtype=jnp.float32)

    weight_ref = jnp.cos(cos_coef * (W1 @ W2))

    # --- f32 path, small (batch, seq, in_channels), rows aligned to p -------
    x = jax.random.normal(kx, (2, 8, in_channels), dtype=jnp.float32)
    out = jax.block_until_ready(outer_linear(x, W1, W2, bias, cos_coef))
    ref = x @ weight_ref + bias
    assert out.shape == ref.shape == (2, 8, out_channels)
    assert jnp.allclose(out, ref, atol=1e-3, rtol=1e-3), \
        float(jnp.max(jnp.abs(out - ref)))

    # --- ragged rows: exercises the p-pad and a multi-step ragged grid ------
    x2 = jax.random.normal(kx2, (3, 67, in_channels), dtype=jnp.float32)
    out2 = jax.block_until_ready(outer_linear(x2, W1, W2, bias, cos_coef))
    ref2 = x2 @ weight_ref + bias
    assert out2.shape == ref2.shape == (3, 67, out_channels)
    assert jnp.allclose(out2, ref2, atol=1e-3, rtol=1e-3), \
        float(jnp.max(jnp.abs(out2 - ref2)))

    # --- bf16 input at the boundary (bf16 operands, f32 accumulation) -------
    x_bf = x.astype(jnp.bfloat16)
    out_bf = jax.block_until_ready(outer_linear(x_bf, W1, W2, bias, cos_coef))
    ref_bf = (x_bf.astype(jnp.float32)
              @ weight_ref.astype(jnp.bfloat16).astype(jnp.float32) + bias)
    assert out_bf.dtype == jnp.bfloat16 and out_bf.shape == ref_bf.shape
    assert jnp.allclose(out_bf.astype(jnp.float32), ref_bf, atol=1e-1, rtol=5e-2), \
        float(jnp.max(jnp.abs(out_bf.astype(jnp.float32) - ref_bf)))

    print("KERNEL_OK")
</pallas_src>

<mosaic_0001>
module attributes {stable_mosaic.version = 11 : i64} {
  func.func @_gemm_bias_kernel(%arg0: i32, %arg1: memref<8x256xf32, #tpu.memory_space<vmem>>, %arg2: memref<256x256xf32, #tpu.memory_space<vmem>>, %arg3: memref<1x256xf32, #tpu.memory_space<vmem>>, %arg4: memref<8x256xf32, #tpu.memory_space<vmem>>) attributes {dimension_semantics = [#tpu.dimension_semantics<parallel>], iteration_bounds = array<i64: 1>, scalar_prefetch = 0 : i64, scratch_operands = 0 : i64, tpu.core_type = #tpu.core_type<tc>, window_params = [{transform_indices = @transform_0, window_bounds = array<i64: 8, 256>}, {pipeline_mode = #tpu.pipeline_mode<synchronous>, transform_indices = @transform_1, window_bounds = array<i64: 256, 256>}, {pipeline_mode = #tpu.pipeline_mode<synchronous>, transform_indices = @transform_2, window_bounds = array<i64: 1, 256>}, {transform_indices = @transform_3, window_bounds = array<i64: 8, 256>}]} {
    %c0 = arith.constant 0 : index
    %c0_0 = arith.constant 0 : index
    %0 = vector.load %arg1[%c0, %c0_0] : memref<8x256xf32, #tpu.memory_space<vmem>>, vector<8x256xf32>
    %c0_1 = arith.constant 0 : index
    %c0_2 = arith.constant 0 : index
    %1 = vector.load %arg2[%c0_1, %c0_2] : memref<256x256xf32, #tpu.memory_space<vmem>>, vector<256x256xf32>
    %cst = arith.constant dense<0.000000e+00> : vector<8x256xf32>
    %2 = tpu.matmul %0, %1, %cst {dimension_numbers = #tpu.dot_dimension_numbers<[1], [0], [0], [1], [0, 0, 1, 1], [], []>} : vector<8x256xf32>, vector<256x256xf32>, vector<8x256xf32> -> vector<8x256xf32>
    %c0_3 = arith.constant 0 : index
    %c0_4 = arith.constant 0 : index
    %3 = vector.load %arg3[%c0_3, %c0_4] : memref<1x256xf32, #tpu.memory_space<vmem>>, vector<1x256xf32>
    %4 = vector.broadcast %3 : vector<1x256xf32> to vector<8x256xf32>
    %5 = arith.addf %2, %4 : vector<8x256xf32>
    %c0_5 = arith.constant 0 : index
    %c0_6 = arith.constant 0 : index
    %6 = vector.load %arg4[%c0_5, %c0_6] : memref<8x256xf32, #tpu.memory_space<vmem>>, vector<8x256xf32>
    tpu.vector_store %arg4[%c0_5, %c0_6], %5 {strides = array<i32>} : memref<8x256xf32, #tpu.memory_space<vmem>>, vector<8x256xf32>,
    return
  }
  func.func @transform_0(%arg0: i32) -> (i32, i32) {
    %c0_i32 = arith.constant 0 : i32
    %c0_i32_0 = arith.constant 0 : i32
    return %arg0, %c0_i32 : i32, i32
  }
  func.func @transform_1(%arg0: i32) -> (i32, i32) {
    %c0_i32 = arith.constant 0 : i32
    %c0_i32_0 = arith.constant 0 : i32
    %c0_i32_1 = arith.constant 0 : i32
    return %c0_i32, %c0_i32_0 : i32, i32
  }
  func.func @transform_2(%arg0: i32) -> (i32, i32) {
    %c0_i32 = arith.constant 0 : i32
    %c0_i32_0 = arith.constant 0 : i32
    %c0_i32_1 = arith.constant 0 : i32
    return %c0_i32, %c0_i32_0 : i32, i32
  }
  func.func @transform_3(%arg0: i32) -> (i32, i32) {
    %c0_i32 = arith.constant 0 : i32
    %c0_i32_0 = arith.constant 0 : i32
    return %arg0, %c0_i32 : i32, i32
  }
}

</mosaic_0001>

<llo_original>
// kernel: tpu_custom_call.1
$region0: #{tpu_custom_call.1}
  #allocation0 [shape = 'u32[]', space=smem, size = 0x4, offset = 0x4, fixed_abs, tag = 'smem constant byte address 0x4 - core index']
  #allocation1 [shape = 'u32[72,128]{1,0:T(1,128)}', space=vmem, size = 0x9000, scoped, tag = 'internal scratch']
  %s0 = inlined_call_operand.hbm [shape: f32[2,256], index: 0, kind: input, shape index: {}]
  %s1 = inlined_call_operand.hbm [shape: f32[256,256], index: 1, kind: input, shape index: {}]
  %s2 = inlined_call_operand.hbm [shape: f32[1,256], index: 2, kind: input, shape index: {}]
  %s3 = inlined_call_operand.hbm [shape: f32[2,256], index: 3, kind: output, shape index: {}]
  %s4 = sld [smem:[#allocation0]]
  $region34: #{tpu_custom_call.1} parent=0
    _
  %s6 = ssub.s32 1, %s4
  %s7 = scalar_select 0, %s6, %s4
  $region1: #{tpu_custom_call.1} parent=0
    #allocation2 [shape = 'u8[8192]{0}', space=vmem, size = 0x2000, scoped, tag = 'input window, operand 0, single buffered']
    #allocation3 [shape = 's32[1]{0}', space=sflag, size = 0x4, scoped, tag = 'scoped memory for tpu_custom_call.1']
    #allocation4 [shape = 's32[1]{0}', space=sflag, size = 0x4, scoped, tag = 'scoped memory for tpu_custom_call.1']
    #allocation5 [shape = 'u8[262144]{0}', space=vmem, size = 0x40000, scoped, tag = 'input window, operand 1, single buffered']
    #allocation6 [shape = 's32[1]{0}', space=sflag, size = 0x4, scoped, tag = 'scoped memory for tpu_custom_call.1']
    #allocation7 [shape = 'u8[1024]{0}', space=vmem, size = 0x400, scoped, tag = 'input window, operand 2, single buffered']
    #allocation8 [shape = 'u8[8192]{0}', space=vmem, size = 0x2000, scoped, tag = 'output window, operand 0, single buffered']
    %8 = vsyncpa [#allocation3], 0
    %9 = vsyncpa [#allocation6], 0
    %10 = vsyncpa [#allocation4], 0
    // Predicated region
    $region2: #{tpu_custom_call.1} parent=1 // pred_check
      _
    $region3: #{tpu_custom_call.1} parent=1 // pred_check_branch
      %12 = sbr.rel (0) target = $region5
    $region4: #{tpu_custom_call.1} parent=1 // pred_region
      %14 = vsyncadd [#allocation3], 192
      %s15 = sshll.u32 %s0, 4
      %s16 = int_to_ptr.hbm [resolvable:$true] %s15
      %s17 = sshll.u32 [#allocation2], 4
      %s18 = int_to_ptr.vmem [resolvable:$true] %s17
      %23 = dma.hbm_to_vmem [thread:$0]  %s16, 64, %s18, [#allocation3], 64, 64, 4
    $region5: #{tpu_custom_call.1} parent=1 // pred_fallthru
      _
    // Predicated region
    $region6: #{tpu_custom_call.1} parent=1 // pred_check
      _
    $region7: #{tpu_custom_call.1} parent=1 // pred_check_branch
      %25 = sbr.rel (0) target = $region9
    $region8: #{tpu_custom_call.1} parent=1 // pred_region
      %27 = vsyncadd [#allocation6], 0
      %s28 = sshll.u32 %s1, 4
      %s29 = int_to_ptr.hbm [resolvable:$true] %s28
      %s30 = sshll.u32 [#allocation5], 4
      %s31 = int_to_ptr.vmem [resolvable:$true] %s30
      %36 = dma.hbm_to_vmem [thread:$0]  %s29, 8192, %s31, [#allocation6], 256, 256, 16
    $region9: #{tpu_custom_call.1} parent=1 // pred_fallthru
      _
    // Predicated region
    $region10: #{tpu_custom_call.1} parent=1 // pred_check
      _
    $region11: #{tpu_custom_call.1} parent=1 // pred_check_branch
      %38 = sbr.rel (0) target = $region13
    $region12: #{tpu_custom_call.1} parent=1 // pred_region
      %40 = vsyncadd [#allocation6], 0
      %s42 = sshll.u32 %s2, 4
      %s43 = int_to_ptr.hbm [resolvable:$true] %s42
      %s44 = sshll.u32 [#allocation7], 4
      %s45 = int_to_ptr.vmem [resolvable:$true] %s44
      %47 = dma.hbm_to_vmem [thread:$0]  %s43, 32, %s45, [#allocation6]
    $region13: #{tpu_custom_call.1} parent=1 // pred_fallthru
      _
    // Predicated region
    $region14: #{tpu_custom_call.1} parent=1 // pred_check
      _
    $region15: #{tpu_custom_call.1} parent=1 // pred_check_branch
      %49 = sbr.rel (0) target = $region17
    $region16: #{tpu_custom_call.1} parent=1 // pred_region
      %51 = dma.done [#allocation3], 256
    $region17: #{tpu_custom_call.1} parent=1 // pred_fallthru
      _
    // Predicated region
    $region18: #{tpu_custom_call.1} parent=1 // pred_check
      _
    $region19: #{tpu_custom_call.1} parent=1 // pred_check_branch
      %53 = sbr.rel (0) target = $region21
    $region20: #{tpu_custom_call.1} parent=1 // pred_region
      %55 = dma.done [#allocation6], 8192
    $region21: #{tpu_custom_call.1} parent=1 // pred_fallthru
      _
    // Predicated region
    $region22: #{tpu_custom_call.1} parent=1 // pred_check
      _
    $region23: #{tpu_custom_call.1} parent=1 // pred_check_branch
      %57 = sbr.rel (0) target = $region25
    $region24: #{tpu_custom_call.1} parent=1 // pred_region
      %59 = dma.done [#allocation6], 32
    $region25: #{tpu_custom_call.1} parent=1 // pred_fallthru
      _
    %v60 = vld [vmem:[#allocation2] sm:$0xf]
    %v61 = vld [vmem:[#allocation2 + $0x4] sm:$0xf]
    %v62 = vld [vmem:[#allocation2 + $0x8] sm:$0xf]
    %v63 = vld [vmem:[#allocation2 + $0xc] sm:$0xf]
    %v64 = vld [vmem:[#allocation5] sm:$0xff]
    %v65 = vld [vmem:[#allocation5 + $0x8] sm:$0xff]
    %v66 = vld [vmem:[#allocation5 + $0x10] sm:$0xff]
    %v67 = vld [vmem:[#allocation5 + $0x18] sm:$0xff]
    %v68 = vld [vmem:[#allocation5 + $0x20] sm:$0xff]
    %v69 = vld [vmem:[#allocation5 + $0x28] sm:$0xff]
    %v70 = vld [vmem:[#allocation5 + $0x30] sm:$0xff]
    %v71 = vld [vmem:[#allocation5 + $0x38] sm:$0xff]
    %v72 = vld [vmem:[#allocation5 + $0x40] sm:$0xff]
    %v73 = vld [vmem:[#allocation5 + $0x48] sm:$0xff]
    %v74 = vld [vmem:[#allocation5 + $0x50] sm:$0xff]
    %v75 = vld [vmem:[#allocation5 + $0x58] sm:$0xff]
    %v76 = vld [vmem:[#allocation5 + $0x60] sm:$0xff]
    %v77 = vld [vmem:[#allocation5 + $0x68] sm:$0xff]
    %v78 = vld [vmem:[#allocation5 + $0x70] sm:$0xff]
    %v79 = vld [vmem:[#allocation5 + $0x78] sm:$0xff]
    %v80 = vld [vmem:[#allocation5 + $0x80] sm:$0xff]
    %v81 = vld [vmem:[#allocation5 + $0x88] sm:$0xff]
    %v82 = vld [vmem:[#allocation5 + $0x90] sm:$0xff]
    %v83 = vld [vmem:[#allocation5 + $0x98] sm:$0xff]
    %v84 = vld [vmem:[#allocation5 + $0xa0] sm:$0xff]
    %v85 = vld [vmem:[#allocation5 + $0xa8] sm:$0xff]
    %v86 = vld [vmem:[#allocation5 + $0xb0] sm:$0xff]
    %v87 = vld [vmem:[#allocation5 + $0xb8] sm:$0xff]
    %v88 = vld [vmem:[#allocation5 + $0xc0] sm:$0xff]
    %v89 = vld [vmem:[#allocation5 + $0xc8] sm:$0xff]
    %v90 = vld [vmem:[#allocation5 + $0xd0] sm:$0xff]
    %v91 = vld [vmem:[#allocation5 + $0xd8] sm:$0xff]
    %v92 = vld [vmem:[#allocation5 + $0xe0] sm:$0xff]
    %v93 = vld [vmem:[#allocation5 + $0xe8] sm:$0xff]
    %v94 = vld [vmem:[#allocation5 + $0xf0] sm:$0xff]
    %v95 = vld [vmem:[#allocation5 + $0xf8] sm:$0xff]
    %v96 = vld [vmem:[#allocation5 + $0x100] sm:$0xff]
    %v97 = vld [vmem:[#allocation5 + $0x108] sm:$0xff]
    %v98 = vld [vmem:[#allocation5 + $0x110] sm:$0xff]
    %v99 = vld [vmem:[#allocation5 + $0x118] sm:$0xff]
    %v100 = vld [vmem:[#allocation5 + $0x120] sm:$0xff]
    %v101 = vld [vmem:[#allocation5 + $0x128] sm:$0xff]
    %v102 = vld [vmem:[#allocation5 + $0x130] sm:$0xff]
    %v103 = vld [vmem:[#allocation5 + $0x138] sm:$0xff]
    %v104 = vld [vmem:[#allocation5 + $0x140] sm:$0xff]
    %v105 = vld [vmem:[#allocation5 + $0x148] sm:$0xff]
    %v106 = vld [vmem:[#allocation5 + $0x150] sm:$0xff]
    %v107 = vld [vmem:[#allocation5 + $0x158] sm:$0xff]
    %v108 = vld [vmem:[#allocation5 + $0x160] sm:$0xff]
    %v109 = vld [vmem:[#allocation5 + $0x168] sm:$0xff]
    %v110 = vld [vmem:[#allocation5 + $0x170] sm:$0xff]
    %v111 = vld [vmem:[#allocation5 + $0x178] sm:$0xff]
    %v112 = vld [vmem:[#allocation5 + $0x180] sm:$0xff]
    %v113 = vld [vmem:[#allocation5 + $0x188] sm:$0xff]
    %v114 = vld [vmem:[#allocation5 + $0x190] sm:$0xff]
    %v115 = vld [vmem:[#allocation5 + $0x198] sm:$0xff]
    %v116 = vld [vmem:[#allocation5 + $0x1a0] sm:$0xff]
    %v117 = vld [vmem:[#allocation5 + $0x1a8] sm:$0xff]
    %v118 = vld [vmem:[#allocation5 + $0x1b0] sm:$0xff]
    %v119 = vld [vmem:[#allocation5 + $0x1b8] sm:$0xff]
    %v120 = vld [vmem:[#allocation5 + $0x1c0] sm:$0xff]
    %v121 = vld [vmem:[#allocation5 + $0x1c8] sm:$0xff]
    %v122 = vld [vmem:[#allocation5 + $0x1d0] sm:$0xff]
    %v123 = vld [vmem:[#allocation5 + $0x1d8] sm:$0xff]
    %v124 = vld [vmem:[#allocation5 + $0x1e0] sm:$0xff]
    %v125 = vld [vmem:[#allocation5 + $0x1e8] sm:$0xff]
    %v126 = vld [vmem:[#allocation5 + $0x1f0] sm:$0xff]
    %v127 = vld [vmem:[#allocation5 + $0x1f8] sm:$0xff]
    %v128 = vld [vmem:[#allocation7] sm:$0x3]
    %v130 = vperm.slane %v128, 0
    %v131 = vperm.slane %v128, 1
    %138 = vst [vmem:[#allocation1] ss:$4 sm:$0xff] %v60
    %s139 = scalar_lea.vmem [#allocation1], 1
    %140 = vst [vmem:[%s139] ss:$4 sm:$0xff] %v61
    %s141 = scalar_lea.vmem [#allocation1], 2
    %142 = vst [vmem:[%s141] ss:$4 sm:$0xff] %v62
    %s143 = scalar_lea.vmem [#allocation1], 3
    %144 = vst [vmem:[%s143] ss:$4 sm:$0xff] %v63
    %v145 = vld.sshfl [vmem:[#allocation1] sm:$0xff pattern:$0x73625140]
    %v146 = vld.sshfl [vmem:[#allocation1 + $0x8] sm:$0xff pattern:$0x73625140]
    %149 = vmatpush.msra.mxu0 %v94
    %150 = vmatpush.msra.mxu0 %v92
    %151 = vmatpush.msra.mxu0 %v90
    %152 = vmatpush.msra.mxu0 %v88
    %153 = vmatpush.msra.mxu0 %v86
    %154 = vmatpush.msra.mxu0 %v84
    %155 = vmatpush.msra.mxu0 %v82
    %156 = vmatpush.msra.mxu0 %v80
    %157 = vmatpush.msra.mxu0 %v78
    %158 = vmatpush.msra.mxu0 %v76
    %159 = vmatpush.msra.mxu0 %v74
    %160 = vmatpush.msra.mxu0 %v72
    %161 = vmatpush.msra.mxu0 %v70
    %162 = vmatpush.msra.mxu0 %v68
    %163 = vmatpush.msra.mxu0 %v66
    %164 = vmatpush.msra.mxu0 %v64
    %165 = vmatmul.f32.gmra.mxu0 %v145
    %v166 = vpop.f32.mrf.mxu0
    %v167 = vadd.f32 %v130, %v166
    %168 = vdwg.mxu0
    %169 = vmatpush.msra.mxu0 %v126
    %170 = vmatpush.msra.mxu0 %v124
    %171 = vmatpush.msra.mxu0 %v122
    %172 = vmatpush.msra.mxu0 %v120
    %173 = vmatpush.msra.mxu0 %v118
    %174 = vmatpush.msra.mxu0 %v116
    %175 = vmatpush.msra.mxu0 %v114
    %176 = vmatpush.msra.mxu0 %v112
    %177 = vmatpush.msra.mxu0 %v110
    %178 = vmatpush.msra.mxu0 %v108
    %179 = vmatpush.msra.mxu0 %v106
    %180 = vmatpush.msra.mxu0 %v104
    %181 = vmatpush.msra.mxu0 %v102
    %182 = vmatpush.msra.mxu0 %v100
    %183 = vmatpush.msra.mxu0 %v98
    %184 = vmatpush.msra.mxu0 %v96
    %185 = vmatmul.f32.gmra.mxu0 %v146
    %v186 = vpop.f32.mrf.mxu0
    %v187 = vadd.f32 %v167, %v186
    %188 = vdwg.mxu0
    %189 = vmatpush.msra.mxu0 %v95
    %190 = vmatpush.msra.mxu0 %v93
    %191 = vmatpush.msra.mxu0 %v91
    %192 = vmatpush.msra.mxu0 %v89
    %193 = vmatpush.msra.mxu0 %v87
    %194 = vmatpush.msra.mxu0 %v85
    %195 = vmatpush.msra.mxu0 %v83
    %196 = vmatpush.msra.mxu0 %v81
    %197 = vmatpush.msra.mxu0 %v79
    %198 = vmatpush.msra.mxu0 %v77
    %199 = vmatpush.msra.mxu0 %v75
    %200 = vmatpush.msra.mxu0 %v73
    %201 = vmatpush.msra.mxu0 %v71
    %202 = vmatpush.msra.mxu0 %v69
    %203 = vmatpush.msra.mxu0 %v67
    %204 = vmatpush.msra.mxu0 %v65
    %205 = vmatmul.f32.gmra.mxu0 %v145
    %v206 = vpop.f32.mrf.mxu0
    %v207 = vadd.f32 %v131, %v206
    %208 = vdwg.mxu0
    %209 = vmatpush.msra.mxu0 %v127
    %210 = vmatpush.msra.mxu0 %v125
    %211 = vmatpush.msra.mxu0 %v123
    %212 = vmatpush.msra.mxu0 %v121
    %213 = vmatpush.msra.mxu0 %v119
    %214 = vmatpush.msra.mxu0 %v117
    %215 = vmatpush.msra.mxu0 %v115
    %216 = vmatpush.msra.mxu0 %v113
    %217 = vmatpush.msra.mxu0 %v111
    %218 = vmatpush.msra.mxu0 %v109
    %219 = vmatpush.msra.mxu0 %v107
    %220 = vmatpush.msra.mxu0 %v105
    %221 = vmatpush.msra.mxu0 %v103
    %222 = vmatpush.msra.mxu0 %v101
    %223 = vmatpush.msra.mxu0 %v99
    %224 = vmatpush.msra.mxu0 %v97
    %225 = vmatmul.f32.gmra.mxu0 %v146
    %v226 = vpop.f32.mrf.mxu0
    %v227 = vadd.f32 %v207, %v226
    %228 = vdwg.mxu0
    %v231 = vrot.slane %v227, 6
    %vm232 = vcmask 1041408
    %v233 = vsel %vm232, %v187, %v231
    %vm234 = vcmask 1043458
    %v235 = vsel %vm234, %v187, %v231
    %v236 = vrot.slane %v235, 2
    %vm237 = vcmask 1045508
    %v238 = vsel %vm237, %v187, %v231
    %v239 = vrot.slane %v238, 4
    %vm240 = vcmask 1045504
    %v241 = vsel %vm240, %v231, %v187
    %v242 = vrot.slane %v241, 6
    %247 = vst [vmem:[#allocation8] sm:$0xf] %v233
    %248 = vst [vmem:[#allocation8 + $0x4] sm:$0xf] %v236
    %249 = vst [vmem:[#allocation8 + $0x8] sm:$0xf] %v239
    %250 = vst [vmem:[#allocation8 + $0xc] sm:$0xf] %v242
    // Predicated region
    $region26: #{tpu_custom_call.1} parent=1 // pred_check
      _
    $region27: #{tpu_custom_call.1} parent=1 // pred_check_branch
      %252 = sbr.rel (0) target = $region29
    $region28: #{tpu_custom_call.1} parent=1 // pred_region
      %254 = vsyncadd [#allocation4], 192
      %s255 = sshll.u32 [#allocation8], 4
      %s256 = int_to_ptr.vmem [resolvable:$true] %s255
      %s257 = sshll.u32 %s3, 4
      %s258 = int_to_ptr.hbm [resolvable:$true] %s257
      %263 = dma.vmem_to_hbm [thread:$0]  %s256, 64, %s258, [#allocation4], 64, 64, 4
    $region29: #{tpu_custom_call.1} parent=1 // pred_fallthru
      _
    // Predicated region
    $region30: #{tpu_custom_call.1} parent=1 // pred_check
      _
    $region31: #{tpu_custom_call.1} parent=1 // pred_check_branch
      %265 = sbr.rel (0) target = $region33
    $region32: #{tpu_custom_call.1} parent=1 // pred_region
      %267 = dma.done [#allocation4], 256
    $region33: #{tpu_custom_call.1} parent=1 // pred_fallthru
      _
    %268 = vsyncpa [#allocation3], 1
    %269 = vsyncpa [#allocation6], 1
    %270 = vsyncpa [#allocation4], 1

</llo_original>
